<compile_context>
chip_gen: v5e
topology: v5e:2x2
jax: 0.10.0
libtpu: 0.0.40
codegen_flags: <defaults>
</compile_context>

<pallas_src>
import functools

import jax
import jax.numpy as jnp
from jax.experimental import pallas as pl
from jax.experimental.pallas import tpu as pltpu


def _center_loss_kernel(labels_ref,      # SMEM (B_pad,) int32 (scalar prefetch)
                        features_ref,    # VMEM (TB, D)
                        centers_ref,     # HBM  (C, D)  (memory_space=pl.ANY)
                        out_ref,         # SMEM (1, 1) f32
                        gather_buf,      # VMEM (TB, D) scratch
                        row_sems,        # DMA semaphores (TB,)
                        acc_ref,         # SMEM (1,) f32 scratch accumulator
                        *, batch_size, tb):
    i = pl.program_id(0)

    @pl.when(i == 0)
    def _():
        acc_ref[0] = jnp.float32(0.0)

    # Label-driven gather of centers rows straight from HBM:
    # start all TB row copies, then wait (copies overlap each other and the
    # pipelined features DMA).
    copies = []
    for r in range(tb):
        lbl = labels_ref[i * tb + r]
        cp = pltpu.make_async_copy(
            centers_ref.at[pl.ds(lbl, 1), :],
            gather_buf.at[pl.ds(r, 1), :],
            row_sems.at[r])
        cp.start()
        copies.append(cp)
    for cp in copies:
        cp.wait()

    feats = features_ref[...].astype(jnp.float32)
    gathered = gather_buf[...].astype(jnp.float32)
    diff = feats - gathered
    sq = diff * diff

    if batch_size % tb != 0:
        # Mask rows of the (zero-)padded last tile.
        row_ids = i * tb + jax.lax.broadcasted_iota(jnp.int32, (tb, 1), 0)
        sq = sq * (row_ids < batch_size).astype(jnp.float32)

    acc_ref[0] += jnp.sum(sq)

    @pl.when(i == pl.num_programs(0) - 1)
    def _():
        out_ref[0, 0] = acc_ref[0] * jnp.float32(1.0 / batch_size)


def center_loss(features, labels, centers, *, tb=8):
    """Pallas equivalent of CenterLoss.forward(features, labels)."""
    B, D = features.shape
    C, Dc = centers.shape
    assert D == Dc
    # TODO(synk): labels are assumed to lie in [0, num_classes); an
    # out-of-range label would DMA an arbitrary centers row (PyTorch raises).

    b_pad = ((B + tb - 1) // tb) * tb
    labels = labels.reshape(B).astype(jnp.int32)
    if b_pad != B:
        features = jnp.pad(features, ((0, b_pad - B), (0, 0)))
        labels = jnp.pad(labels, (0, b_pad - B))

    grid = (b_pad // tb,)
    kernel = functools.partial(_center_loss_kernel, batch_size=B, tb=tb)

    out = pl.pallas_call(
        kernel,
        out_shape=jax.ShapeDtypeStruct((1, 1), jnp.float32),
        grid_spec=pltpu.PrefetchScalarGridSpec(
            num_scalar_prefetch=1,
            grid=grid,
            in_specs=[
                # Batch-tiled features: auto double-buffered by Pallas.
                pl.BlockSpec((tb, D), lambda i, lab: (i, 0)),
                # Centers stay in HBM; rows are DMA-gathered by label.
                pl.BlockSpec(memory_space=pl.ANY),
            ],
            out_specs=pl.BlockSpec((1, 1), lambda i, lab: (0, 0),
                                   memory_space=pltpu.MemorySpace.SMEM),
            scratch_shapes=[
                pltpu.VMEM((tb, D), centers.dtype),
                pltpu.SemaphoreType.DMA((tb,)),
                pltpu.SMEM((1,), jnp.float32),
            ],
        ),
        compiler_params=pltpu.CompilerParams(
            # Batch axis accumulates into one shared SMEM scalar -> serial.
            dimension_semantics=("arbitrary",),
        ),
        cost_estimate=pl.CostEstimate(
            flops=3 * B * D,
            transcendentals=0,
            bytes_accessed=(features.size * features.dtype.itemsize
                            + B * D * centers.dtype.itemsize
                            + labels.size * 4 + 4),
        ),
    )(labels, features, centers)
    return out[0, 0]


if __name__ == "__main__":
    key = jax.random.PRNGKey(0)
    k_centers, k_feat, k_lab = jax.random.split(key, 3)

    num_classes, feat_dim, batch = 10, 32, 8

    # Deterministic "parameter" init (matches nn.Parameter(torch.randn(C, D))).
    centers = jax.random.normal(k_centers, (num_classes, feat_dim),
                                dtype=jnp.float32)
    features = jax.random.normal(k_feat, (batch, feat_dim), dtype=jnp.float32)
    labels = jax.random.randint(k_lab, (batch,), 0, num_classes,
                                dtype=jnp.int32)

    loss = center_loss(features, labels, centers)
    jax.block_until_ready(loss)

    # Pure-JAX reference for sanity.
    ref = jnp.sum((features - centers[labels]) ** 2) / batch
    assert jnp.allclose(loss, ref, rtol=1e-5, atol=1e-5), (loss, ref)

    print("KERNEL_OK")
</pallas_src>

<mosaic_0001>
module attributes {stable_mosaic.version = 11 : i64} {
  func.func @_center_loss_kernel(%arg0: i32, %arg1: memref<8xi32, #tpu.memory_space<smem>>, %arg2: memref<8x32xf32, #tpu.memory_space<vmem>>, %arg3: memref<10x32xf32, #tpu.memory_space<any>>, %arg4: memref<1x1xf32, #tpu.memory_space<smem>>, %arg5: memref<8x32xf32, #tpu.memory_space<vmem>>, %arg6: memref<8x!tpu.dma_semaphore, #tpu.memory_space<semaphore_mem>>, %arg7: memref<1xf32, #tpu.memory_space<smem>>) attributes {dimension_semantics = [#tpu.dimension_semantics<arbitrary>], iteration_bounds = array<i64: 1>, scalar_prefetch = 1 : i64, scratch_operands = 3 : i64, tpu.core_type = #tpu.core_type<tc>, window_params = [{transform_indices = @transform_0, window_bounds = array<i64: 8, 32>}, {}, {transform_indices = @transform_2, window_bounds = array<i64: 1, 1>}]} {
    %c0_i32 = arith.constant 0 : i32
    %0 = arith.cmpi eq, %arg0, %c0_i32 : i32
    %1 = arith.extui %0 : i1 to i32
    %c0_i32_0 = arith.constant 0 : i32
    %2 = arith.cmpi ne, %1, %c0_i32_0 : i32
    scf.if %2 {
      %cst_80 = arith.constant 0.000000e+00 : f32
      %c0_81 = arith.constant 0 : index
      %113 = memref.load %arg7[%c0_81] : memref<1xf32, #tpu.memory_space<smem>>
      memref.store %cst_80, %arg7[%c0_81] : memref<1xf32, #tpu.memory_space<smem>>
    } else {
    }
    %c8_i32 = arith.constant 8 : i32
    %3 = arith.muli %arg0, %c8_i32 : i32
    %c0_i32_1 = arith.constant 0 : i32
    %4 = arith.addi %3, %c0_i32_1 : i32
    %5 = arith.index_cast %4 : i32 to index
    %6 = memref.load %arg1[%5] : memref<8xi32, #tpu.memory_space<smem>>
    %c0_i32_2 = arith.constant 0 : i32
    %c0_i32_3 = arith.constant 0 : i32
    %7 = tpu.memref_slice %arg3[%6, %c0_i32_3] : memref<10x32xf32, #tpu.memory_space<any>> -> memref<1x32xf32, #tpu.memory_space<any>>
    %c0_i32_4 = arith.constant 0 : i32
    %c0_i32_5 = arith.constant 0 : i32
    %8 = tpu.memref_slice %arg5[%c0_i32_4, %c0_i32_5] : memref<8x32xf32, #tpu.memory_space<vmem>> -> memref<1x32xf32, #tpu.memory_space<vmem>>
    %9 = tpu.memref_slice %arg6[%c0_i32_2] : memref<8x!tpu.dma_semaphore, #tpu.memory_space<semaphore_mem>> -> memref<1x!tpu.dma_semaphore, #tpu.memory_space<semaphore_mem>>
    %10 = tpu.memref_squeeze %9 : memref<1x!tpu.dma_semaphore, #tpu.memory_space<semaphore_mem>> -> memref<!tpu.dma_semaphore, #tpu.memory_space<semaphore_mem>>
    tpu.enqueue_dma source(%7 : memref<1x32xf32, #tpu.memory_space<any>>) target(%8 : memref<1x32xf32, #tpu.memory_space<vmem>>) target_semaphore(%10 : memref<!tpu.dma_semaphore, #tpu.memory_space<semaphore_mem>>)
    %c8_i32_6 = arith.constant 8 : i32
    %11 = arith.muli %arg0, %c8_i32_6 : i32
    %c1_i32 = arith.constant 1 : i32
    %12 = arith.addi %11, %c1_i32 : i32
    %13 = arith.index_cast %12 : i32 to index
    %14 = memref.load %arg1[%13] : memref<8xi32, #tpu.memory_space<smem>>
    %c1_i32_7 = arith.constant 1 : i32
    %c0_i32_8 = arith.constant 0 : i32
    %15 = tpu.memref_slice %arg3[%14, %c0_i32_8] : memref<10x32xf32, #tpu.memory_space<any>> -> memref<1x32xf32, #tpu.memory_space<any>>
    %c1_i32_9 = arith.constant 1 : i32
    %c0_i32_10 = arith.constant 0 : i32
    %16 = tpu.memref_slice %arg5[%c1_i32_9, %c0_i32_10] : memref<8x32xf32, #tpu.memory_space<vmem>> -> memref<1x32xf32, #tpu.memory_space<vmem>>
    %17 = tpu.memref_slice %arg6[%c1_i32_7] : memref<8x!tpu.dma_semaphore, #tpu.memory_space<semaphore_mem>> -> memref<1x!tpu.dma_semaphore, #tpu.memory_space<semaphore_mem>>
    %18 = tpu.memref_squeeze %17 : memref<1x!tpu.dma_semaphore, #tpu.memory_space<semaphore_mem>> -> memref<!tpu.dma_semaphore, #tpu.memory_space<semaphore_mem>>
    tpu.enqueue_dma source(%15 : memref<1x32xf32, #tpu.memory_space<any>>) target(%16 : memref<1x32xf32, #tpu.memory_space<vmem>>) target_semaphore(%18 : memref<!tpu.dma_semaphore, #tpu.memory_space<semaphore_mem>>)
    %c8_i32_11 = arith.constant 8 : i32
    %19 = arith.muli %arg0, %c8_i32_11 : i32
    %c2_i32 = arith.constant 2 : i32
    %20 = arith.addi %19, %c2_i32 : i32
    %21 = arith.index_cast %20 : i32 to index
    %22 = memref.load %arg1[%21] : memref<8xi32, #tpu.memory_space<smem>>
    %c2_i32_12 = arith.constant 2 : i32
    %c0_i32_13 = arith.constant 0 : i32
    %23 = tpu.memref_slice %arg3[%22, %c0_i32_13] : memref<10x32xf32, #tpu.memory_space<any>> -> memref<1x32xf32, #tpu.memory_space<any>>
    %c2_i32_14 = arith.constant 2 : i32
    %c0_i32_15 = arith.constant 0 : i32
    %24 = tpu.memref_slice %arg5[%c2_i32_14, %c0_i32_15] : memref<8x32xf32, #tpu.memory_space<vmem>> -> memref<1x32xf32, #tpu.memory_space<vmem>>
    %25 = tpu.memref_slice %arg6[%c2_i32_12] : memref<8x!tpu.dma_semaphore, #tpu.memory_space<semaphore_mem>> -> memref<1x!tpu.dma_semaphore, #tpu.memory_space<semaphore_mem>>
    %26 = tpu.memref_squeeze %25 : memref<1x!tpu.dma_semaphore, #tpu.memory_space<semaphore_mem>> -> memref<!tpu.dma_semaphore, #tpu.memory_space<semaphore_mem>>
    tpu.enqueue_dma source(%23 : memref<1x32xf32, #tpu.memory_space<any>>) target(%24 : memref<1x32xf32, #tpu.memory_space<vmem>>) target_semaphore(%26 : memref<!tpu.dma_semaphore, #tpu.memory_space<semaphore_mem>>)
    %c8_i32_16 = arith.constant 8 : i32
    %27 = arith.muli %arg0, %c8_i32_16 : i32
    %c3_i32 = arith.constant 3 : i32
    %28 = arith.addi %27, %c3_i32 : i32
    %29 = arith.index_cast %28 : i32 to index
    %30 = memref.load %arg1[%29] : memref<8xi32, #tpu.memory_space<smem>>
    %c3_i32_17 = arith.constant 3 : i32
    %c0_i32_18 = arith.constant 0 : i32
    %31 = tpu.memref_slice %arg3[%30, %c0_i32_18] : memref<10x32xf32, #tpu.memory_space<any>> -> memref<1x32xf32, #tpu.memory_space<any>>
    %c3_i32_19 = arith.constant 3 : i32
    %c0_i32_20 = arith.constant 0 : i32
    %32 = tpu.memref_slice %arg5[%c3_i32_19, %c0_i32_20] : memref<8x32xf32, #tpu.memory_space<vmem>> -> memref<1x32xf32, #tpu.memory_space<vmem>>
    %33 = tpu.memref_slice %arg6[%c3_i32_17] : memref<8x!tpu.dma_semaphore, #tpu.memory_space<semaphore_mem>> -> memref<1x!tpu.dma_semaphore, #tpu.memory_space<semaphore_mem>>
    %34 = tpu.memref_squeeze %33 : memref<1x!tpu.dma_semaphore, #tpu.memory_space<semaphore_mem>> -> memref<!tpu.dma_semaphore, #tpu.memory_space<semaphore_mem>>
    tpu.enqueue_dma source(%31 : memref<1x32xf32, #tpu.memory_space<any>>) target(%32 : memref<1x32xf32, #tpu.memory_space<vmem>>) target_semaphore(%34 : memref<!tpu.dma_semaphore, #tpu.memory_space<semaphore_mem>>)
    %c8_i32_21 = arith.constant 8 : i32
    %35 = arith.muli %arg0, %c8_i32_21 : i32
    %c4_i32 = arith.constant 4 : i32
    %36 = arith.addi %35, %c4_i32 : i32
    %37 = arith.index_cast %36 : i32 to index
    %38 = memref.load %arg1[%37] : memref<8xi32, #tpu.memory_space<smem>>
    %c4_i32_22 = arith.constant 4 : i32
    %c0_i32_23 = arith.constant 0 : i32
    %39 = tpu.memref_slice %arg3[%38, %c0_i32_23] : memref<10x32xf32, #tpu.memory_space<any>> -> memref<1x32xf32, #tpu.memory_space<any>>
    %c4_i32_24 = arith.constant 4 : i32
    %c0_i32_25 = arith.constant 0 : i32
    %40 = tpu.memref_slice %arg5[%c4_i32_24, %c0_i32_25] : memref<8x32xf32, #tpu.memory_space<vmem>> -> memref<1x32xf32, #tpu.memory_space<vmem>>
    %41 = tpu.memref_slice %arg6[%c4_i32_22] : memref<8x!tpu.dma_semaphore, #tpu.memory_space<semaphore_mem>> -> memref<1x!tpu.dma_semaphore, #tpu.memory_space<semaphore_mem>>
    %42 = tpu.memref_squeeze %41 : memref<1x!tpu.dma_semaphore, #tpu.memory_space<semaphore_mem>> -> memref<!tpu.dma_semaphore, #tpu.memory_space<semaphore_mem>>
    tpu.enqueue_dma source(%39 : memref<1x32xf32, #tpu.memory_space<any>>) target(%40 : memref<1x32xf32, #tpu.memory_space<vmem>>) target_semaphore(%42 : memref<!tpu.dma_semaphore, #tpu.memory_space<semaphore_mem>>)
    %c8_i32_26 = arith.constant 8 : i32
    %43 = arith.muli %arg0, %c8_i32_26 : i32
    %c5_i32 = arith.constant 5 : i32
    %44 = arith.addi %43, %c5_i32 : i32
    %45 = arith.index_cast %44 : i32 to index
    %46 = memref.load %arg1[%45] : memref<8xi32, #tpu.memory_space<smem>>
    %c5_i32_27 = arith.constant 5 : i32
    %c0_i32_28 = arith.constant 0 : i32
    %47 = tpu.memref_slice %arg3[%46, %c0_i32_28] : memref<10x32xf32, #tpu.memory_space<any>> -> memref<1x32xf32, #tpu.memory_space<any>>
    %c5_i32_29 = arith.constant 5 : i32
    %c0_i32_30 = arith.constant 0 : i32
    %48 = tpu.memref_slice %arg5[%c5_i32_29, %c0_i32_30] : memref<8x32xf32, #tpu.memory_space<vmem>> -> memref<1x32xf32, #tpu.memory_space<vmem>>
    %49 = tpu.memref_slice %arg6[%c5_i32_27] : memref<8x!tpu.dma_semaphore, #tpu.memory_space<semaphore_mem>> -> memref<1x!tpu.dma_semaphore, #tpu.memory_space<semaphore_mem>>
    %50 = tpu.memref_squeeze %49 : memref<1x!tpu.dma_semaphore, #tpu.memory_space<semaphore_mem>> -> memref<!tpu.dma_semaphore, #tpu.memory_space<semaphore_mem>>
    tpu.enqueue_dma source(%47 : memref<1x32xf32, #tpu.memory_space<any>>) target(%48 : memref<1x32xf32, #tpu.memory_space<vmem>>) target_semaphore(%50 : memref<!tpu.dma_semaphore, #tpu.memory_space<semaphore_mem>>)
    %c8_i32_31 = arith.constant 8 : i32
    %51 = arith.muli %arg0, %c8_i32_31 : i32
    %c6_i32 = arith.constant 6 : i32
    %52 = arith.addi %51, %c6_i32 : i32
    %53 = arith.index_cast %52 : i32 to index
    %54 = memref.load %arg1[%53] : memref<8xi32, #tpu.memory_space<smem>>
    %c6_i32_32 = arith.constant 6 : i32
    %c0_i32_33 = arith.constant 0 : i32
    %55 = tpu.memref_slice %arg3[%54, %c0_i32_33] : memref<10x32xf32, #tpu.memory_space<any>> -> memref<1x32xf32, #tpu.memory_space<any>>
    %c6_i32_34 = arith.constant 6 : i32
    %c0_i32_35 = arith.constant 0 : i32
    %56 = tpu.memref_slice %arg5[%c6_i32_34, %c0_i32_35] : memref<8x32xf32, #tpu.memory_space<vmem>> -> memref<1x32xf32, #tpu.memory_space<vmem>>
    %57 = tpu.memref_slice %arg6[%c6_i32_32] : memref<8x!tpu.dma_semaphore, #tpu.memory_space<semaphore_mem>> -> memref<1x!tpu.dma_semaphore, #tpu.memory_space<semaphore_mem>>
    %58 = tpu.memref_squeeze %57 : memref<1x!tpu.dma_semaphore, #tpu.memory_space<semaphore_mem>> -> memref<!tpu.dma_semaphore, #tpu.memory_space<semaphore_mem>>
    tpu.enqueue_dma source(%55 : memref<1x32xf32, #tpu.memory_space<any>>) target(%56 : memref<1x32xf32, #tpu.memory_space<vmem>>) target_semaphore(%58 : memref<!tpu.dma_semaphore, #tpu.memory_space<semaphore_mem>>)
    %c8_i32_36 = arith.constant 8 : i32
    %59 = arith.muli %arg0, %c8_i32_36 : i32
    %c7_i32 = arith.constant 7 : i32
    %60 = arith.addi %59, %c7_i32 : i32
    %61 = arith.index_cast %60 : i32 to index
    %62 = memref.load %arg1[%61] : memref<8xi32, #tpu.memory_space<smem>>
    %c7_i32_37 = arith.constant 7 : i32
    %c0_i32_38 = arith.constant 0 : i32
    %63 = tpu.memref_slice %arg3[%62, %c0_i32_38] : memref<10x32xf32, #tpu.memory_space<any>> -> memref<1x32xf32, #tpu.memory_space<any>>
    %c7_i32_39 = arith.constant 7 : i32
    %c0_i32_40 = arith.constant 0 : i32
    %64 = tpu.memref_slice %arg5[%c7_i32_39, %c0_i32_40] : memref<8x32xf32, #tpu.memory_space<vmem>> -> memref<1x32xf32, #tpu.memory_space<vmem>>
    %65 = tpu.memref_slice %arg6[%c7_i32_37] : memref<8x!tpu.dma_semaphore, #tpu.memory_space<semaphore_mem>> -> memref<1x!tpu.dma_semaphore, #tpu.memory_space<semaphore_mem>>
    %66 = tpu.memref_squeeze %65 : memref<1x!tpu.dma_semaphore, #tpu.memory_space<semaphore_mem>> -> memref<!tpu.dma_semaphore, #tpu.memory_space<semaphore_mem>>
    tpu.enqueue_dma source(%63 : memref<1x32xf32, #tpu.memory_space<any>>) target(%64 : memref<1x32xf32, #tpu.memory_space<vmem>>) target_semaphore(%66 : memref<!tpu.dma_semaphore, #tpu.memory_space<semaphore_mem>>)
    %c0_i32_41 = arith.constant 0 : i32
    %c0_i32_42 = arith.constant 0 : i32
    %67 = tpu.memref_slice %arg3[%6, %c0_i32_42] : memref<10x32xf32, #tpu.memory_space<any>> -> memref<1x32xf32, #tpu.memory_space<any>>
    %c0_i32_43 = arith.constant 0 : i32
    %c0_i32_44 = arith.constant 0 : i32
    %68 = tpu.memref_slice %arg5[%c0_i32_43, %c0_i32_44] : memref<8x32xf32, #tpu.memory_space<vmem>> -> memref<1x32xf32, #tpu.memory_space<vmem>>
    %69 = tpu.memref_slice %arg6[%c0_i32_41] : memref<8x!tpu.dma_semaphore, #tpu.memory_space<semaphore_mem>> -> memref<1x!tpu.dma_semaphore, #tpu.memory_space<semaphore_mem>>
    %70 = tpu.memref_squeeze %69 : memref<1x!tpu.dma_semaphore, #tpu.memory_space<semaphore_mem>> -> memref<!tpu.dma_semaphore, #tpu.memory_space<semaphore_mem>>
    tpu.wait_dma2 semaphore(%70 : memref<!tpu.dma_semaphore, #tpu.memory_space<semaphore_mem>>) src(%67 : memref<1x32xf32, #tpu.memory_space<any>>) dst(%68 : memref<1x32xf32, #tpu.memory_space<vmem>>)
    %c1_i32_45 = arith.constant 1 : i32
    %c0_i32_46 = arith.constant 0 : i32
    %71 = tpu.memref_slice %arg3[%14, %c0_i32_46] : memref<10x32xf32, #tpu.memory_space<any>> -> memref<1x32xf32, #tpu.memory_space<any>>
    %c1_i32_47 = arith.constant 1 : i32
    %c0_i32_48 = arith.constant 0 : i32
    %72 = tpu.memref_slice %arg5[%c1_i32_47, %c0_i32_48] : memref<8x32xf32, #tpu.memory_space<vmem>> -> memref<1x32xf32, #tpu.memory_space<vmem>>
    %73 = tpu.memref_slice %arg6[%c1_i32_45] : memref<8x!tpu.dma_semaphore, #tpu.memory_space<semaphore_mem>> -> memref<1x!tpu.dma_semaphore, #tpu.memory_space<semaphore_mem>>
    %74 = tpu.memref_squeeze %73 : memref<1x!tpu.dma_semaphore, #tpu.memory_space<semaphore_mem>> -> memref<!tpu.dma_semaphore, #tpu.memory_space<semaphore_mem>>
    tpu.wait_dma2 semaphore(%74 : memref<!tpu.dma_semaphore, #tpu.memory_space<semaphore_mem>>) src(%71 : memref<1x32xf32, #tpu.memory_space<any>>) dst(%72 : memref<1x32xf32, #tpu.memory_space<vmem>>)
    %c2_i32_49 = arith.constant 2 : i32
    %c0_i32_50 = arith.constant 0 : i32
    %75 = tpu.memref_slice %arg3[%22, %c0_i32_50] : memref<10x32xf32, #tpu.memory_space<any>> -> memref<1x32xf32, #tpu.memory_space<any>>
    %c2_i32_51 = arith.constant 2 : i32
    %c0_i32_52 = arith.constant 0 : i32
    %76 = tpu.memref_slice %arg5[%c2_i32_51, %c0_i32_52] : memref<8x32xf32, #tpu.memory_space<vmem>> -> memref<1x32xf32, #tpu.memory_space<vmem>>
    %77 = tpu.memref_slice %arg6[%c2_i32_49] : memref<8x!tpu.dma_semaphore, #tpu.memory_space<semaphore_mem>> -> memref<1x!tpu.dma_semaphore, #tpu.memory_space<semaphore_mem>>
    %78 = tpu.memref_squeeze %77 : memref<1x!tpu.dma_semaphore, #tpu.memory_space<semaphore_mem>> -> memref<!tpu.dma_semaphore, #tpu.memory_space<semaphore_mem>>
    tpu.wait_dma2 semaphore(%78 : memref<!tpu.dma_semaphore, #tpu.memory_space<semaphore_mem>>) src(%75 : memref<1x32xf32, #tpu.memory_space<any>>) dst(%76 : memref<1x32xf32, #tpu.memory_space<vmem>>)
    %c3_i32_53 = arith.constant 3 : i32
    %c0_i32_54 = arith.constant 0 : i32
    %79 = tpu.memref_slice %arg3[%30, %c0_i32_54] : memref<10x32xf32, #tpu.memory_space<any>> -> memref<1x32xf32, #tpu.memory_space<any>>
    %c3_i32_55 = arith.constant 3 : i32
    %c0_i32_56 = arith.constant 0 : i32
    %80 = tpu.memref_slice %arg5[%c3_i32_55, %c0_i32_56] : memref<8x32xf32, #tpu.memory_space<vmem>> -> memref<1x32xf32, #tpu.memory_space<vmem>>
    %81 = tpu.memref_slice %arg6[%c3_i32_53] : memref<8x!tpu.dma_semaphore, #tpu.memory_space<semaphore_mem>> -> memref<1x!tpu.dma_semaphore, #tpu.memory_space<semaphore_mem>>
    %82 = tpu.memref_squeeze %81 : memref<1x!tpu.dma_semaphore, #tpu.memory_space<semaphore_mem>> -> memref<!tpu.dma_semaphore, #tpu.memory_space<semaphore_mem>>
    tpu.wait_dma2 semaphore(%82 : memref<!tpu.dma_semaphore, #tpu.memory_space<semaphore_mem>>) src(%79 : memref<1x32xf32, #tpu.memory_space<any>>) dst(%80 : memref<1x32xf32, #tpu.memory_space<vmem>>)
    %c4_i32_57 = arith.constant 4 : i32
    %c0_i32_58 = arith.constant 0 : i32
    %83 = tpu.memref_slice %arg3[%38, %c0_i32_58] : memref<10x32xf32, #tpu.memory_space<any>> -> memref<1x32xf32, #tpu.memory_space<any>>
    %c4_i32_59 = arith.constant 4 : i32
    %c0_i32_60 = arith.constant 0 : i32
    %84 = tpu.memref_slice %arg5[%c4_i32_59, %c0_i32_60] : memref<8x32xf32, #tpu.memory_space<vmem>> -> memref<1x32xf32, #tpu.memory_space<vmem>>
    %85 = tpu.memref_slice %arg6[%c4_i32_57] : memref<8x!tpu.dma_semaphore, #tpu.memory_space<semaphore_mem>> -> memref<1x!tpu.dma_semaphore, #tpu.memory_space<semaphore_mem>>
    %86 = tpu.memref_squeeze %85 : memref<1x!tpu.dma_semaphore, #tpu.memory_space<semaphore_mem>> -> memref<!tpu.dma_semaphore, #tpu.memory_space<semaphore_mem>>
    tpu.wait_dma2 semaphore(%86 : memref<!tpu.dma_semaphore, #tpu.memory_space<semaphore_mem>>) src(%83 : memref<1x32xf32, #tpu.memory_space<any>>) dst(%84 : memref<1x32xf32, #tpu.memory_space<vmem>>)
    %c5_i32_61 = arith.constant 5 : i32
    %c0_i32_62 = arith.constant 0 : i32
    %87 = tpu.memref_slice %arg3[%46, %c0_i32_62] : memref<10x32xf32, #tpu.memory_space<any>> -> memref<1x32xf32, #tpu.memory_space<any>>
    %c5_i32_63 = arith.constant 5 : i32
    %c0_i32_64 = arith.constant 0 : i32
    %88 = tpu.memref_slice %arg5[%c5_i32_63, %c0_i32_64] : memref<8x32xf32, #tpu.memory_space<vmem>> -> memref<1x32xf32, #tpu.memory_space<vmem>>
    %89 = tpu.memref_slice %arg6[%c5_i32_61] : memref<8x!tpu.dma_semaphore, #tpu.memory_space<semaphore_mem>> -> memref<1x!tpu.dma_semaphore, #tpu.memory_space<semaphore_mem>>
    %90 = tpu.memref_squeeze %89 : memref<1x!tpu.dma_semaphore, #tpu.memory_space<semaphore_mem>> -> memref<!tpu.dma_semaphore, #tpu.memory_space<semaphore_mem>>
    tpu.wait_dma2 semaphore(%90 : memref<!tpu.dma_semaphore, #tpu.memory_space<semaphore_mem>>) src(%87 : memref<1x32xf32, #tpu.memory_space<any>>) dst(%88 : memref<1x32xf32, #tpu.memory_space<vmem>>)
    %c6_i32_65 = arith.constant 6 : i32
    %c0_i32_66 = arith.constant 0 : i32
    %91 = tpu.memref_slice %arg3[%54, %c0_i32_66] : memref<10x32xf32, #tpu.memory_space<any>> -> memref<1x32xf32, #tpu.memory_space<any>>
    %c6_i32_67 = arith.constant 6 : i32
    %c0_i32_68 = arith.constant 0 : i32
    %92 = tpu.memref_slice %arg5[%c6_i32_67, %c0_i32_68] : memref<8x32xf32, #tpu.memory_space<vmem>> -> memref<1x32xf32, #tpu.memory_space<vmem>>
    %93 = tpu.memref_slice %arg6[%c6_i32_65] : memref<8x!tpu.dma_semaphore, #tpu.memory_space<semaphore_mem>> -> memref<1x!tpu.dma_semaphore, #tpu.memory_space<semaphore_mem>>
    %94 = tpu.memref_squeeze %93 : memref<1x!tpu.dma_semaphore, #tpu.memory_space<semaphore_mem>> -> memref<!tpu.dma_semaphore, #tpu.memory_space<semaphore_mem>>
    tpu.wait_dma2 semaphore(%94 : memref<!tpu.dma_semaphore, #tpu.memory_space<semaphore_mem>>) src(%91 : memref<1x32xf32, #tpu.memory_space<any>>) dst(%92 : memref<1x32xf32, #tpu.memory_space<vmem>>)
    %c7_i32_69 = arith.constant 7 : i32
    %c0_i32_70 = arith.constant 0 : i32
    %95 = tpu.memref_slice %arg3[%62, %c0_i32_70] : memref<10x32xf32, #tpu.memory_space<any>> -> memref<1x32xf32, #tpu.memory_space<any>>
    %c7_i32_71 = arith.constant 7 : i32
    %c0_i32_72 = arith.constant 0 : i32
    %96 = tpu.memref_slice %arg5[%c7_i32_71, %c0_i32_72] : memref<8x32xf32, #tpu.memory_space<vmem>> -> memref<1x32xf32, #tpu.memory_space<vmem>>
    %97 = tpu.memref_slice %arg6[%c7_i32_69] : memref<8x!tpu.dma_semaphore, #tpu.memory_space<semaphore_mem>> -> memref<1x!tpu.dma_semaphore, #tpu.memory_space<semaphore_mem>>
    %98 = tpu.memref_squeeze %97 : memref<1x!tpu.dma_semaphore, #tpu.memory_space<semaphore_mem>> -> memref<!tpu.dma_semaphore, #tpu.memory_space<semaphore_mem>>
    tpu.wait_dma2 semaphore(%98 : memref<!tpu.dma_semaphore, #tpu.memory_space<semaphore_mem>>) src(%95 : memref<1x32xf32, #tpu.memory_space<any>>) dst(%96 : memref<1x32xf32, #tpu.memory_space<vmem>>)
    %c0 = arith.constant 0 : index
    %c0_73 = arith.constant 0 : index
    %99 = vector.load %arg2[%c0, %c0_73] : memref<8x32xf32, #tpu.memory_space<vmem>>, vector<8x32xf32>
    %c0_74 = arith.constant 0 : index
    %c0_75 = arith.constant 0 : index
    %100 = vector.load %arg5[%c0_74, %c0_75] : memref<8x32xf32, #tpu.memory_space<vmem>>, vector<8x32xf32>
    %101 = arith.subf %99, %100 : vector<8x32xf32>
    %102 = arith.mulf %101, %101 : vector<8x32xf32>
    %c0_76 = arith.constant 0 : index
    %103 = memref.load %arg7[%c0_76] : memref<1xf32, #tpu.memory_space<smem>>
    %104 = vector.shape_cast %102 : vector<8x32xf32> to vector<1x8x32xf32>
    %cst = arith.constant dense<0.000000e+00> : vector<1xf32>
    %105 = vector.multi_reduction <add>, %104, %cst [1, 2] : vector<1x8x32xf32> to vector<1xf32>
    %106 = vector.shape_cast %105 : vector<1xf32> to vector<1x1x1xf32>
    %107 = vector.extract %106[0, 0, 0] : f32 from vector<1x1x1xf32>
    %108 = arith.addf %103, %107 : f32
    %c0_77 = arith.constant 0 : index
    %109 = memref.load %arg7[%c0_77] : memref<1xf32, #tpu.memory_space<smem>>
    memref.store %108, %arg7[%c0_77] : memref<1xf32, #tpu.memory_space<smem>>
    %c0_i32_78 = arith.constant 0 : i32
    %110 = arith.cmpi eq, %arg0, %c0_i32_78 : i32
    %111 = arith.extui %110 : i1 to i32
    %c0_i32_79 = arith.constant 0 : i32
    %112 = arith.cmpi ne, %111, %c0_i32_79 : i32
    scf.if %112 {
      %c0_80 = arith.constant 0 : index
      %113 = memref.load %arg7[%c0_80] : memref<1xf32, #tpu.memory_space<smem>>
      %cst_81 = arith.constant 1.250000e-01 : f32
      %114 = arith.mulf %113, %cst_81 : f32
      %c0_82 = arith.constant 0 : index
      %c0_83 = arith.constant 0 : index
      %115 = memref.load %arg4[%c0_82, %c0_83] : memref<1x1xf32, #tpu.memory_space<smem>>
      memref.store %114, %arg4[%c0_82, %c0_83] : memref<1x1xf32, #tpu.memory_space<smem>>
    } else {
    }
    return
  }
  func.func @transform_0(%arg0: i32, %arg1: memref<8xi32, #tpu.memory_space<smem>>) -> (i32, i32) {
    %c0_i32 = arith.constant 0 : i32
    %c0_i32_0 = arith.constant 0 : i32
    return %arg0, %c0_i32 : i32, i32
  }
  func.func @transform_2(%arg0: i32, %arg1: memref<8xi32, #tpu.memory_space<smem>>) -> (i32, i32) {
    %c0_i32 = arith.constant 0 : i32
    %c0_i32_0 = arith.constant 0 : i32
    %c0_i32_1 = arith.constant 0 : i32
    return %c0_i32, %c0_i32_0 : i32, i32
  }
}

</mosaic_0001>

<llo_original>
// kernel: tpu_custom_call.1
$region0: #{tpu_custom_call.1}
  #allocation0 [shape = 'u32[]', space=smem, size = 0x4, offset = 0x4, fixed_abs, tag = 'smem constant byte address 0x4 - core index']
  #allocation1 [shape = 'u32[72,128]{1,0:T(1,128)}', space=vmem, size = 0x9000, scoped, tag = 'internal scratch']
  #allocation2 [shape = 'f32[8,32]{1,0:T(8,128)}', space=vmem, size = 0x1000, scoped, tag = 'scratch operand']
  #allocation3 [shape = 's32[8]{0}', space=sflag, size = 0x20, scoped, tag = 'scratch operand']
  #allocation4 [shape = 'f32[1]{0:T(128)}', space=smem, size = 0x200, scoped, tag = 'scratch operand']
  #allocation5 [shape = 's32[1]{0}', space=sflag, size = 0x4, scoped, tag = 'scoped memory for tpu_custom_call.1']
  #allocation6 [shape = 'u8[512]{0}', space=smem, size = 0x200, scoped, tag = 'prefetched SMEM operand 0']
  #allocation11 [shape = 's32[]', space=sflag, size = 0x4, offset = 0, fixed_abs, tag = 'sflag constant byte address 0x0 - dummy sync flag']
  #allocation12 [shape = 's32[]', space=sflag, size = 0x4, offset = 0, fixed_abs, tag = 'sflag constant byte address 0x0 - dummy sync flag']
  #allocation13 [shape = 'u32[]', space=smem, size = 0x4, offset = 0x44, fixed_abs, tag = 'smem constant byte address 0x44 - assertion arg 0']
  #allocation14 [shape = 'u32[]', space=smem, size = 0x4, offset = 0x48, fixed_abs, tag = 'smem constant byte address 0x48 - assertion arg 1']
  #allocation15 [shape = 's32[]', space=sflag, size = 0x4, offset = 0, fixed_abs, tag = 'sflag constant byte address 0x0 - dummy sync flag']
  #allocation16 [shape = 's32[]', space=sflag, size = 0x4, offset = 0, fixed_abs, tag = 'sflag constant byte address 0x0 - dummy sync flag']
  #allocation17 [shape = 's32[]', space=sflag, size = 0x4, offset = 0, fixed_abs, tag = 'sflag constant byte address 0x0 - dummy sync flag']
  #allocation18 [shape = 's32[]', space=sflag, size = 0x4, offset = 0, fixed_abs, tag = 'sflag constant byte address 0x0 - dummy sync flag']
  #allocation19 [shape = 's32[]', space=sflag, size = 0x4, offset = 0, fixed_abs, tag = 'sflag constant byte address 0x0 - dummy sync flag']
  #allocation20 [shape = 's32[]', space=sflag, size = 0x4, offset = 0, fixed_abs, tag = 'sflag constant byte address 0x0 - dummy sync flag']
  #allocation21 [shape = 's32[]', space=sflag, size = 0x4, offset = 0, fixed_abs, tag = 'sflag constant byte address 0x0 - dummy sync flag']
  #allocation22 [shape = 's32[]', space=sflag, size = 0x4, offset = 0, fixed_abs, tag = 'sflag constant byte address 0x0 - dummy sync flag']
  #allocation23 [shape = 's32[]', space=sflag, size = 0x4, offset = 0, fixed_abs, tag = 'sflag constant byte address 0x0 - dummy sync flag']
  #allocation24 [shape = 's32[]', space=sflag, size = 0x4, offset = 0, fixed_abs, tag = 'sflag constant byte address 0x0 - dummy sync flag']
  #allocation25 [shape = 's32[]', space=sflag, size = 0x4, offset = 0, fixed_abs, tag = 'sflag constant byte address 0x0 - dummy sync flag']
  #allocation26 [shape = 's32[]', space=sflag, size = 0x4, offset = 0, fixed_abs, tag = 'sflag constant byte address 0x0 - dummy sync flag']
  #allocation27 [shape = 's32[]', space=sflag, size = 0x4, offset = 0, fixed_abs, tag = 'sflag constant byte address 0x0 - dummy sync flag']
  #allocation28 [shape = 's32[]', space=sflag, size = 0x4, offset = 0, fixed_abs, tag = 'sflag constant byte address 0x0 - dummy sync flag']
  %s0 = inlined_call_operand.hbm [shape: s32[8], index: 0, kind: input, shape index: {}]
  %s1 = inlined_call_operand.hbm [shape: f32[8,32], index: 1, kind: input, shape index: {}]
  %s2 = inlined_call_operand.hbm [shape: f32[10,32], index: 2, kind: input, shape index: {}]
  %s3 = inlined_call_operand.hbm [shape: f32[1,1], index: 3, kind: output, shape index: {}]
  %s4 = sld [smem:[#allocation0]]
  $region58: #{tpu_custom_call.1} parent=0
    _
  %s6 = ssub.s32 1, %s4
  %s7 = scalar_select 0, %s6, %s4
  %s9 = sshll.u32 %s0, 4
  %s10 = int_to_ptr.hbm [resolvable:$true] %s9
  %12 = dma.hbm_to_smem %s10, 16, [#allocation6], [#allocation5]
  %14 = dma.done [#allocation5], 16
  %15 = sfence
  $region1: #{tpu_custom_call.1} parent=0
    #allocation7 [shape = 'u8[4096]{0}', space=vmem, size = 0x1000, scoped, tag = 'input window, operand 1, single buffered']
    #allocation8 [shape = 's32[1]{0}', space=sflag, size = 0x4, scoped, tag = 'scoped memory for tpu_custom_call.1']
    #allocation9 [shape = 's32[1]{0}', space=sflag, size = 0x4, scoped, tag = 'scoped memory for tpu_custom_call.1']
    #allocation10 [shape = 'u8[512]{0}', space=smem, size = 0x200, scoped, tag = 'output window, operand 0, single buffered']
    %16 = vsyncpa [#allocation8], 0
    %17 = vsyncpa [#allocation9], 0
    // Predicated region
    $region2: #{tpu_custom_call.1} parent=1 // pred_check
      _
    $region3: #{tpu_custom_call.1} parent=1 // pred_check_branch
      %19 = sbr.rel (0) target = $region5
    $region4: #{tpu_custom_call.1} parent=1 // pred_region
      %21 = vsyncadd [#allocation8], 0
      %s23 = sshll.u32 %s1, 4
      %s24 = int_to_ptr.hbm [resolvable:$true] %s23
      %s25 = sshll.u32 [#allocation7], 4
      %s26 = int_to_ptr.vmem [resolvable:$true] %s25
      %28 = dma.hbm_to_vmem [thread:$0]  %s24, 128, %s26, [#allocation8]
    $region5: #{tpu_custom_call.1} parent=1 // pred_fallthru
      _
    // Predicated region
    $region6: #{tpu_custom_call.1} parent=1 // pred_check
      _
    $region7: #{tpu_custom_call.1} parent=1 // pred_check_branch
      %30 = sbr.rel (0) target = $region9
    $region8: #{tpu_custom_call.1} parent=1 // pred_region
      %32 = dma.done [#allocation8], 128
    $region9: #{tpu_custom_call.1} parent=1 // pred_fallthru
      _
    %p33 = scmp.eq.s32.totalorder 0, 0
    // Predicated region
    $region10: #{tpu_custom_call.1} parent=1 // pred_check
      %p34 = pneg %p33
    $region11: #{tpu_custom_call.1} parent=1 // pred_check_branch
      %36 = sbr.rel (%p34) target = $region13
    $region12: #{tpu_custom_call.1} parent=1 // pred_region
      %s37 = scalar_lea.smem [#allocation4], 0
      %38 = sst [smem:[%s37]] 0.0
    $region13: #{tpu_custom_call.1} parent=1 // pred_fallthru
      _
    %s39 = smul.u32 0, 8
    %s40 = sld [smem:[#allocation6 + %s39]]
    %s41 = scalar_lea.hbm %s2, %s40
    // Predicated region
    $region14: #{tpu_custom_call.1} parent=1 // pred_check
      _
    $region15: #{tpu_custom_call.1} parent=1 // pred_check_branch
      %43 = sbr.rel target = $region17
    $region16: #{tpu_custom_call.1} parent=1 // pred_region
      %44 = sst [smem:[#allocation13]] [#allocation12]
      %45 = sst [smem:[#allocation14]] [#allocation11]
    $region17: #{tpu_custom_call.1} parent=1 // pred_fallthru
      _
    %47 = shalt.err (0)
    %s49 = sshll.u32 %s41, 4
    %s50 = int_to_ptr.hbm [resolvable:$true] %s49
    %s51 = sshll.u32 [#allocation2], 4
    %s52 = int_to_ptr.vmem [resolvable:$true] %s51
    %54 = dma.hbm_to_vmem [thread:$0]  %s50, 16, %s52, [#allocation3]
    %s55 = sadd.s32 %s39, 1
    %s56 = sld [smem:[#allocation6 + %s55]]
    %s57 = scalar_lea.hbm %s2, %s56
    %s58 = scalar_lea.vmem [#allocation2], 1
    %s59 = scalar_lea.sflag [#allocation3], 1
    // Predicated region
    $region18: #{tpu_custom_call.1} parent=1 // pred_check
      _
    $region19: #{tpu_custom_call.1} parent=1 // pred_check_branch
      %61 = sbr.rel target = $region21
    $region20: #{tpu_custom_call.1} parent=1 // pred_region
      %62 = sst [smem:[#allocation13]] [#allocation16]
      %63 = sst [smem:[#allocation14]] [#allocation15]
    $region21: #{tpu_custom_call.1} parent=1 // pred_fallthru
      _
    %65 = shalt.err (0)
    %s67 = sshll.u32 %s57, 4
    %s68 = int_to_ptr.hbm [resolvable:$true] %s67
    %s69 = sshll.u32 %s58, 4
    %s70 = int_to_ptr.vmem [resolvable:$true] %s69
    %72 = dma.hbm_to_vmem [thread:$0]  %s68, 16, %s70, %s59
    %s73 = sadd.s32 %s39, 2
    %s74 = sld [smem:[#allocation6 + %s73]]
    %s75 = scalar_lea.hbm %s2, %s74
    %s76 = scalar_lea.vmem [#allocation2], 2
    %s77 = scalar_lea.sflag [#allocation3], 2
    // Predicated region
    $region22: #{tpu_custom_call.1} parent=1 // pred_check
      _
    $region23: #{tpu_custom_call.1} parent=1 // pred_check_branch
      %79 = sbr.rel target = $region25
    $region24: #{tpu_custom_call.1} parent=1 // pred_region
      %80 = sst [smem:[#allocation13]] [#allocation18]
      %81 = sst [smem:[#allocation14]] [#allocation17]
    $region25: #{tpu_custom_call.1} parent=1 // pred_fallthru
      _
    %83 = shalt.err (0)
    %s85 = sshll.u32 %s75, 4
    %s86 = int_to_ptr.hbm [resolvable:$true] %s85
    %s87 = sshll.u32 %s76, 4
    %s88 = int_to_ptr.vmem [resolvable:$true] %s87
    %90 = dma.hbm_to_vmem [thread:$0]  %s86, 16, %s88, %s77
    %s91 = sadd.s32 %s39, 3
    %s92 = sld [smem:[#allocation6 + %s91]]
    %s93 = scalar_lea.hbm %s2, %s92
    %s94 = scalar_lea.vmem [#allocation2], 3
    %s95 = scalar_lea.sflag [#allocation3], 3
    // Predicated region
    $region26: #{tpu_custom_call.1} parent=1 // pred_check
      _
    $region27: #{tpu_custom_call.1} parent=1 // pred_check_branch
      %97 = sbr.rel target = $region29
    $region28: #{tpu_custom_call.1} parent=1 // pred_region
      %98 = sst [smem:[#allocation13]] [#allocation20]
      %99 = sst [smem:[#allocation14]] [#allocation19]
    $region29: #{tpu_custom_call.1} parent=1 // pred_fallthru
      _
    %101 = shalt.err (0)
    %s103 = sshll.u32 %s93, 4
    %s104 = int_to_ptr.hbm [resolvable:$true] %s103
    %s105 = sshll.u32 %s94, 4
    %s106 = int_to_ptr.vmem [resolvable:$true] %s105
    %108 = dma.hbm_to_vmem [thread:$0]  %s104, 16, %s106, %s95
    %s109 = sadd.s32 %s39, 4
    %s110 = sld [smem:[#allocation6 + %s109]]
    %s111 = scalar_lea.hbm %s2, %s110
    %s112 = scalar_lea.vmem [#allocation2], 4
    %s113 = scalar_lea.sflag [#allocation3], 4
    // Predicated region
    $region30: #{tpu_custom_call.1} parent=1 // pred_check
      _
    $region31: #{tpu_custom_call.1} parent=1 // pred_check_branch
      %115 = sbr.rel target = $region33
    $region32: #{tpu_custom_call.1} parent=1 // pred_region
      %116 = sst [smem:[#allocation13]] [#allocation22]
      %117 = sst [smem:[#allocation14]] [#allocation21]
    $region33: #{tpu_custom_call.1} parent=1 // pred_fallthru
      _
    %119 = shalt.err (0)
    %s121 = sshll.u32 %s111, 4
    %s122 = int_to_ptr.hbm [resolvable:$true] %s121
    %s123 = sshll.u32 %s112, 4
    %s124 = int_to_ptr.vmem [resolvable:$true] %s123
    %126 = dma.hbm_to_vmem [thread:$0]  %s122, 16, %s124, %s113
    %s127 = sadd.s32 %s39, 5
    %s128 = sld [smem:[#allocation6 + %s127]]
    %s129 = scalar_lea.hbm %s2, %s128
    %s130 = scalar_lea.vmem [#allocation2], 5
    %s131 = scalar_lea.sflag [#allocation3], 5
    // Predicated region
    $region34: #{tpu_custom_call.1} parent=1 // pred_check
      _
    $region35: #{tpu_custom_call.1} parent=1 // pred_check_branch
      %133 = sbr.rel target = $region37
    $region36: #{tpu_custom_call.1} parent=1 // pred_region
      %134 = sst [smem:[#allocation13]] [#allocation24]
      %135 = sst [smem:[#allocation14]] [#allocation23]
    $region37: #{tpu_custom_call.1} parent=1 // pred_fallthru
      _
    %137 = shalt.err (0)
    %s139 = sshll.u32 %s129, 4
    %s140 = int_to_ptr.hbm [resolvable:$true] %s139
    %s141 = sshll.u32 %s130, 4
    %s142 = int_to_ptr.vmem [resolvable:$true] %s141
    %144 = dma.hbm_to_vmem [thread:$0]  %s140, 16, %s142, %s131
    %s145 = sadd.s32 %s39, 6
    %s146 = sld [smem:[#allocation6 + %s145]]
    %s147 = scalar_lea.hbm %s2, %s146
    %s148 = scalar_lea.vmem [#allocation2], 6
    %s149 = scalar_lea.sflag [#allocation3], 6
    // Predicated region
    $region38: #{tpu_custom_call.1} parent=1 // pred_check
      _
    $region39: #{tpu_custom_call.1} parent=1 // pred_check_branch
      %151 = sbr.rel target = $region41
    $region40: #{tpu_custom_call.1} parent=1 // pred_region
      %152 = sst [smem:[#allocation13]] [#allocation26]
      %153 = sst [smem:[#allocation14]] [#allocation25]
    $region41: #{tpu_custom_call.1} parent=1 // pred_fallthru
      _
    %155 = shalt.err (0)
    %s157 = sshll.u32 %s147, 4
    %s158 = int_to_ptr.hbm [resolvable:$true] %s157
    %s159 = sshll.u32 %s148, 4
    %s160 = int_to_ptr.vmem [resolvable:$true] %s159
    %162 = dma.hbm_to_vmem [thread:$0]  %s158, 16, %s160, %s149
    %s163 = sadd.s32 %s39, 7
    %s164 = sld [smem:[#allocation6 + %s163]]
    %s165 = scalar_lea.hbm %s2, %s164
    %s166 = scalar_lea.vmem [#allocation2], 7
    %s167 = scalar_lea.sflag [#allocation3], 7
    // Predicated region
    $region42: #{tpu_custom_call.1} parent=1 // pred_check
      _
    $region43: #{tpu_custom_call.1} parent=1 // pred_check_branch
      %169 = sbr.rel target = $region45
    $region44: #{tpu_custom_call.1} parent=1 // pred_region
      %170 = sst [smem:[#allocation13]] [#allocation28]
      %171 = sst [smem:[#allocation14]] [#allocation27]
    $region45: #{tpu_custom_call.1} parent=1 // pred_fallthru
      _
    %173 = shalt.err (0)
    %s175 = sshll.u32 %s165, 4
    %s176 = int_to_ptr.hbm [resolvable:$true] %s175
    %s177 = sshll.u32 %s166, 4
    %s178 = int_to_ptr.vmem [resolvable:$true] %s177
    %180 = dma.hbm_to_vmem [thread:$0]  %s176, 16, %s178, %s167
    %s181 = smul.u32 1, 1
    %s182 = sshll.u32 %s181, 4
    %183 = dma.done [#allocation3], %s182
    %s184 = sshll.u32 %s181, 4
    %185 = dma.done %s59, %s184
    %s186 = sshll.u32 %s181, 4
    %187 = dma.done %s77, %s186
    %s188 = sshll.u32 %s181, 4
    %189 = dma.done %s95, %s188
    %s190 = sshll.u32 %s181, 4
    %191 = dma.done %s113, %s190
    %s192 = sshll.u32 %s181, 4
    %193 = dma.done %s131, %s192
    %s194 = sshll.u32 %s181, 4
    %195 = dma.done %s149, %s194
    %s196 = sshll.u32 %s181, 4
    %197 = dma.done %s167, %s196
    %v198 = vld [vmem:[#allocation7] sm:$0xff]
    %v199 = vld [vmem:[#allocation2] sm:$0xff]
    %v200 = vsub.f32 %v198, %v199
    %v201 = vmul.f32 %v200, %v200
    %s202 = sld [smem:[#allocation4]]
    %vm203 = vcmask 261120
    %v204 = vsel %vm203, %v201, 0.0
    %205 = vadd.xlane.f32.xlu0 %v204
    %v206 = vpop.xlane.xlu0 %205
    %v207 = vrot.slane %v206, 4
    %v208 = vadd.f32 %v206, %v207
    %v209 = vrot.slane %v208, 2
    %v210 = vadd.f32 %v208, %v209
    %v211 = vrot.slane %v210, 1
    %v212 = vadd.f32 %v210, %v211
    %s213 = vtos %v212
    %s214 = sadd.f32 %s202, %s213
    %s215 = scalar_lea.smem [#allocation4], 0
    %216 = sst [smem:[%s215]] %s214
    // Predicated region
    $region46: #{tpu_custom_call.1} parent=1 // pred_check
      %p217 = pneg %p33
    $region47: #{tpu_custom_call.1} parent=1 // pred_check_branch
      %219 = sbr.rel (%p217) target = $region49
    $region48: #{tpu_custom_call.1} parent=1 // pred_region
      %s220 = sld [smem:[#allocation4]]
      %s221 = smul.f32 %s220, 0.125
      %s222 = scalar_lea.smem [#allocation10], 0
      %223 = sst [smem:[%s222]] %s221
    $region49: #{tpu_custom_call.1} parent=1 // pred_fallthru
      _
    // Predicated region
    $region50: #{tpu_custom_call.1} parent=1 // pred_check
      _
    $region51: #{tpu_custom_call.1} parent=1 // pred_check_branch
      %225 = sbr.rel (0) target = $region53
    $region52: #{tpu_custom_call.1} parent=1 // pred_region
      %227 = vsyncadd [#allocation9], 0
      %s229 = sshll.u32 %s3, 4
      %s230 = int_to_ptr.hbm [resolvable:$true] %s229
      %232 = dma.smem_to_hbm [#allocation10], 16, %s230, [#allocation9]
    $region53: #{tpu_custom_call.1} parent=1 // pred_fallthru
      _
    // Predicated region
    $region54: #{tpu_custom_call.1} parent=1 // pred_check
      _
    $region55: #{tpu_custom_call.1} parent=1 // pred_check_branch
      %234 = sbr.rel (0) target = $region57
    $region56: #{tpu_custom_call.1} parent=1 // pred_region
      %236 = dma.done [#allocation9], 16
    $region57: #{tpu_custom_call.1} parent=1 // pred_fallthru
      _
    %237 = sfence
    %238 = vsyncpa [#allocation8], 1
    %239 = vsyncpa [#allocation9], 1
  %240 = vsyncmov [#allocation3]
  %s241 = vpop.sfrf %240
  %p242 = scmp.eq.s32.totalorder %s241, 0
  %p243 = pneg %p242
  %245 = shalt.err (%p243)
  %s246 = scalar_lea.sflag [#allocation3], 1
  %247 = vsyncmov %s246
  %s248 = vpop.sfrf %247
  %p249 = scmp.eq.s32.totalorder %s248, 0
  %p250 = pneg %p249
  %252 = shalt.err (%p250)
  %s253 = scalar_lea.sflag [#allocation3], 2
  %254 = vsyncmov %s253
  %s255 = vpop.sfrf %254
  %p256 = scmp.eq.s32.totalorder %s255, 0
  %p257 = pneg %p256
  %259 = shalt.err (%p257)
  %s260 = scalar_lea.sflag [#allocation3], 3
  %261 = vsyncmov %s260
  %s262 = vpop.sfrf %261
  %p263 = scmp.eq.s32.totalorder %s262, 0
  %p264 = pneg %p263
  %266 = shalt.err (%p264)
  %s267 = scalar_lea.sflag [#allocation3], 4
  %268 = vsyncmov %s267
  %s269 = vpop.sfrf %268
  %p270 = scmp.eq.s32.totalorder %s269, 0
  %p271 = pneg %p270
  %273 = shalt.err (%p271)
  %s274 = scalar_lea.sflag [#allocation3], 5
  %275 = vsyncmov %s274
  %s276 = vpop.sfrf %275
  %p277 = scmp.eq.s32.totalorder %s276, 0
  %p278 = pneg %p277
  %280 = shalt.err (%p278)
  %s281 = scalar_lea.sflag [#allocation3], 6
  %282 = vsyncmov %s281
  %s283 = vpop.sfrf %282
  %p284 = scmp.eq.s32.totalorder %s283, 0
  %p285 = pneg %p284
  %287 = shalt.err (%p285)
  %s288 = scalar_lea.sflag [#allocation3], 7
  %289 = vsyncmov %s288
  %s290 = vpop.sfrf %289
  %p291 = scmp.eq.s32.totalorder %s290, 0
  %p292 = pneg %p291
  %294 = shalt.err (%p292)

</llo_original>
